<compile_context>
chip_gen: v5e
topology: v5e:2x2
jax: 0.10.0
libtpu: 0.0.40
codegen_flags: <defaults>
</compile_context>

<pallas_src>
import jax
import jax.numpy as jnp
from jax.experimental import pallas as pl
from jax.experimental.pallas import tpu as pltpu


def _round_up(n: int, m: int) -> int:
    return ((n + m - 1) // m) * m


def mlp_kernel(x_ref, w1_ref, b1_ref, w2_ref, b2_ref, o_ref):
    # x arrives f32; cast to bf16 right before the MXU (hidden under DMA).
    x = x_ref[...].astype(w1_ref.dtype)
    h = jnp.dot(x, w1_ref[...], preferred_element_type=jnp.float32)
    h = h + b1_ref[...]                       # f32 bias [1, H] broadcasts over rows
    # Sigmoid via a single EUP tanh — avoids an f32 divide on the VALU.
    h = 0.5 * (jnp.tanh(0.5 * h) + 1.0)
    out = jnp.dot(h.astype(w2_ref.dtype), w2_ref[...],
                  preferred_element_type=jnp.float32)
    o_ref[...] = (out + b2_ref[...]).astype(o_ref.dtype)


def prepare_params(w1, b1, w2, b2, *, matmul_dtype=jnp.bfloat16):
    """One-time parameter packing: bf16 weights, f32 row-vector biases.

    Call this once at init time; do NOT call it per forward pass.
    """
    hidden = w1.shape[1]
    out_dim = w2.shape[1]
    w1_p = w1.astype(matmul_dtype)                                  # [784, H]
    b1_p = b1.reshape(1, hidden).astype(jnp.float32)                # [1, H]
    w2_p = w2.astype(matmul_dtype)                                  # [H, 10]
    b2_p = b2.reshape(1, out_dim).astype(jnp.float32)               # [1, 10]
    return w1_p, b1_p, w2_p, b2_p


def mlp_forward(x, w1_p, b1_p, w2_p, b2_p, *, block_b=1024,
                single_shot_max=512):
    """y = sigmoid(x @ w1 + b1) @ w2 + b2.

    x: [B, 784] (f32 or bf16); w1_p/b1_p/w2_p/b2_p from prepare_params().
    """
    B, in_dim = x.shape
    hidden = w1_p.shape[1]
    out_dim = w2_p.shape[1]
    out_dtype = x.dtype

    if B <= single_shot_max:
        # Tiny batch: single invocation, no grid -> no pipeline prologue /
        # epilogue; everything lives in VMEM for the call. No padding of any
        # kind — block shapes equal the full array dims.
        return pl.pallas_call(
            mlp_kernel,
            out_shape=jax.ShapeDtypeStruct((B, out_dim), out_dtype),
            in_specs=[pl.BlockSpec(memory_space=pltpu.MemorySpace.VMEM)] * 5,
            out_specs=pl.BlockSpec(memory_space=pltpu.MemorySpace.VMEM),
        )(x, w1_p, b1_p, w2_p, b2_p)

    # Batch-tiled grid. tm chosen so the grid always has >= 2 steps (so the
    # "parallel" axis shards across v7x's two TensorCores) while staying at
    # the HBM-roofline sweet spot (<= block_b rows). Ragged last tile is
    # handled by Pallas (OOB reads unspecified, OOB writes dropped) — no
    # zero-padded copy of x is ever materialized.
    tm = min(block_b, max(256, _round_up(pl.cdiv(B, 2), 256)))
    grid = (pl.cdiv(B, tm),)

    return pl.pallas_call(
        mlp_kernel,
        out_shape=jax.ShapeDtypeStruct((B, out_dim), out_dtype),
        grid=grid,
        in_specs=[
            pl.BlockSpec((tm, in_dim), lambda i: (i, 0)),       # x tile
            pl.BlockSpec((in_dim, hidden), lambda i: (0, 0)),   # w1 (VMEM-resident)
            pl.BlockSpec((1, hidden), lambda i: (0, 0)),        # b1
            pl.BlockSpec((hidden, out_dim), lambda i: (0, 0)),  # w2
            pl.BlockSpec((1, out_dim), lambda i: (0, 0)),       # b2
        ],
        out_specs=pl.BlockSpec((tm, out_dim), lambda i: (i, 0)),
        compiler_params=pltpu.CompilerParams(
            dimension_semantics=("parallel",)),
    )(x, w1_p, b1_p, w2_p, b2_p)


def reference_forward(x, w1, b1, w2, b2, matmul_dtype=jnp.float32):
    h = jnp.dot(x.astype(matmul_dtype), w1.astype(matmul_dtype),
                preferred_element_type=jnp.float32) + b1.reshape(1, -1)
    h = jax.nn.sigmoid(h)
    return jnp.dot(h.astype(matmul_dtype), w2.astype(matmul_dtype),
                   preferred_element_type=jnp.float32) + b2.reshape(1, -1)


if __name__ == "__main__":
    IN_DIM = 28 * 28   # fixed by the module
    HIDDEN = 256       # nn.Linear(784, hidden_dim) default hidden_dim=256
    OUT_DIM = 10
    BATCH = 8

    key = jax.random.PRNGKey(0)
    kx, k1, kb1, k2, kb2 = jax.random.split(key, 5)

    # PyTorch-Linear-like uniform init: U(-1/sqrt(fan_in), 1/sqrt(fan_in))
    bound1 = 1.0 / (IN_DIM ** 0.5)
    bound2 = 1.0 / (HIDDEN ** 0.5)
    x = jax.random.normal(kx, (BATCH, IN_DIM), dtype=jnp.float32)
    w1 = jax.random.uniform(k1, (IN_DIM, HIDDEN), minval=-bound1, maxval=bound1,
                            dtype=jnp.float32)
    b1 = jax.random.uniform(kb1, (1, HIDDEN), minval=-bound1, maxval=bound1,
                            dtype=jnp.float32)
    w2 = jax.random.uniform(k2, (HIDDEN, OUT_DIM), minval=-bound2, maxval=bound2,
                            dtype=jnp.float32)
    b2 = jax.random.uniform(kb2, (1, OUT_DIM), minval=-bound2, maxval=bound2,
                            dtype=jnp.float32)

    # One-time parameter packing (bf16 weights, f32 biases).
    params = prepare_params(w1, b1, w2, b2)

    # --- small-batch (single-shot) path ---
    out = mlp_forward(x, *params)
    jax.block_until_ready(out)
    assert out.shape == (BATCH, OUT_DIM)

    ref_bf16 = reference_forward(x, w1, b1, w2, b2, matmul_dtype=jnp.bfloat16)
    assert jnp.allclose(out, ref_bf16, atol=2e-3, rtol=2e-3), (
        f"max diff vs bf16 ref: {jnp.max(jnp.abs(out - ref_bf16))}")
    ref_f32 = reference_forward(x, w1, b1, w2, b2, matmul_dtype=jnp.float32)
    assert jnp.allclose(out, ref_f32, atol=5e-2, rtol=5e-2), (
        f"max diff vs f32 ref: {jnp.max(jnp.abs(out - ref_f32))}")

    # --- grid path with a ragged last tile (exercises >=2 grid steps) ---
    BATCH_BIG = 600
    xb = jax.random.normal(jax.random.PRNGKey(1), (BATCH_BIG, IN_DIM),
                           dtype=jnp.float32)
    out_big = mlp_forward(xb, *params)
    jax.block_until_ready(out_big)
    assert out_big.shape == (BATCH_BIG, OUT_DIM)
    ref_big = reference_forward(xb, w1, b1, w2, b2, matmul_dtype=jnp.bfloat16)
    assert jnp.allclose(out_big, ref_big, atol=2e-3, rtol=2e-3), (
        f"max diff vs bf16 ref (grid path): "
        f"{jnp.max(jnp.abs(out_big - ref_big))}")

    print("KERNEL_OK")
</pallas_src>

<mosaic_0001>
module attributes {stable_mosaic.version = 11 : i64} {
  func.func @mlp_kernel(%arg0: memref<8x784xf32, #tpu.memory_space<vmem>>, %arg1: memref<784x256xbf16, #tpu.memory_space<vmem>>, %arg2: memref<1x256xf32, #tpu.memory_space<vmem>>, %arg3: memref<256x10xbf16, #tpu.memory_space<vmem>>, %arg4: memref<1x10xf32, #tpu.memory_space<vmem>>, %arg5: memref<8x10xf32, #tpu.memory_space<vmem>>) attributes {dimension_semantics = [], scalar_prefetch = 0 : i64, scratch_operands = 0 : i64, tpu.core_type = #tpu.core_type<tc>} {
    %c0 = arith.constant 0 : index
    %c0_0 = arith.constant 0 : index
    %0 = vector.load %arg0[%c0, %c0_0] : memref<8x784xf32, #tpu.memory_space<vmem>>, vector<8x784xf32>
    %1 = arith.truncf %0 : vector<8x784xf32> to vector<8x784xbf16>
    %c0_1 = arith.constant 0 : index
    %c0_2 = arith.constant 0 : index
    %2 = vector.load %arg1[%c0_1, %c0_2] : memref<784x256xbf16, #tpu.memory_space<vmem>>, vector<784x256xbf16>
    %cst = arith.constant dense<0.000000e+00> : vector<8x256xf32>
    %3 = tpu.matmul %1, %2, %cst {dimension_numbers = #tpu.dot_dimension_numbers<[1], [0], [0], [1], [0, 0, 1, 1], [], []>} : vector<8x784xbf16>, vector<784x256xbf16>, vector<8x256xf32> -> vector<8x256xf32>
    %c0_3 = arith.constant 0 : index
    %c0_4 = arith.constant 0 : index
    %4 = vector.load %arg2[%c0_3, %c0_4] : memref<1x256xf32, #tpu.memory_space<vmem>>, vector<1x256xf32>
    %5 = vector.broadcast %4 : vector<1x256xf32> to vector<8x256xf32>
    %6 = arith.addf %3, %5 : vector<8x256xf32>
    %cst_5 = arith.constant 5.000000e-01 : f32
    %7 = vector.broadcast %cst_5 : f32 to vector<8x256xf32>
    %8 = arith.mulf %7, %6 : vector<8x256xf32>
    %9 = math.tanh %8 : vector<8x256xf32>
    %cst_6 = arith.constant 1.000000e+00 : f32
    %10 = vector.broadcast %cst_6 : f32 to vector<8x256xf32>
    %11 = arith.addf %9, %10 : vector<8x256xf32>
    %cst_7 = arith.constant 5.000000e-01 : f32
    %12 = vector.broadcast %cst_7 : f32 to vector<8x256xf32>
    %13 = arith.mulf %12, %11 : vector<8x256xf32>
    %14 = arith.truncf %13 : vector<8x256xf32> to vector<8x256xbf16>
    %c0_8 = arith.constant 0 : index
    %c0_9 = arith.constant 0 : index
    %15 = vector.load %arg3[%c0_8, %c0_9] : memref<256x10xbf16, #tpu.memory_space<vmem>>, vector<256x10xbf16>
    %cst_10 = arith.constant dense<0.000000e+00> : vector<8x10xf32>
    %16 = tpu.matmul %14, %15, %cst_10 {dimension_numbers = #tpu.dot_dimension_numbers<[1], [0], [0], [1], [0, 0, 1, 1], [], []>} : vector<8x256xbf16>, vector<256x10xbf16>, vector<8x10xf32> -> vector<8x10xf32>
    %c0_11 = arith.constant 0 : index
    %c0_12 = arith.constant 0 : index
    %17 = vector.load %arg4[%c0_11, %c0_12] : memref<1x10xf32, #tpu.memory_space<vmem>>, vector<1x10xf32>
    %18 = vector.broadcast %17 : vector<1x10xf32> to vector<8x10xf32>
    %19 = arith.addf %16, %18 : vector<8x10xf32>
    %c0_13 = arith.constant 0 : index
    %c0_14 = arith.constant 0 : index
    %20 = vector.load %arg5[%c0_13, %c0_14] : memref<8x10xf32, #tpu.memory_space<vmem>>, vector<8x10xf32>
    tpu.vector_store %arg5[%c0_13, %c0_14], %19 {strides = array<i32>} : memref<8x10xf32, #tpu.memory_space<vmem>>, vector<8x10xf32>,
    return
  }
}

</mosaic_0001>

<llo_original>
// kernel: tpu_custom_call.1
$region0: #{tpu_custom_call.1}
  #allocation0 [shape = 'u32[]', space=smem, size = 0x4, offset = 0x4, fixed_abs, tag = 'smem constant byte address 0x4 - core index']
  #allocation1 [shape = 'u32[72,128]{1,0:T(1,128)}', space=vmem, size = 0x9000, scoped, tag = 'internal scratch']
  %s0 = inlined_call_operand.vmem [shape: f32[8,784], index: 0, kind: input, shape index: {}]
  %s1 = inlined_call_operand.hbm [shape: bf16[784,256], index: 1, kind: input, shape index: {}]
  %s2 = inlined_call_operand.vmem [shape: f32[1,256], index: 2, kind: input, shape index: {}]
  %s3 = inlined_call_operand.vmem [shape: bf16[256,10], index: 3, kind: input, shape index: {}]
  %s4 = inlined_call_operand.vmem [shape: f32[1,10], index: 4, kind: input, shape index: {}]
  %s5 = inlined_call_operand.hbm [shape: f32[8,10], index: 5, kind: output, shape index: {}]
  %s6 = sld [smem:[#allocation0]]
  $region34: #{tpu_custom_call.1} parent=0
    _
  %s8 = ssub.s32 1, %s6
  %s9 = scalar_select 0, %s8, %s6
  $region1: #{tpu_custom_call.1} parent=0
    #allocation2 [shape = 'u8[401408]{0}', space=vmem, size = 0x62000, scoped, tag = 'input window, operand 1, single buffered']
    #allocation3 [shape = 's32[1]{0}', space=sflag, size = 0x4, scoped, tag = 'scoped memory for tpu_custom_call.1']
    #allocation4 [shape = 's32[1]{0}', space=sflag, size = 0x4, scoped, tag = 'scoped memory for tpu_custom_call.1']
    #allocation5 [shape = 'u8[4096]{0}', space=vmem, size = 0x1000, scoped, tag = 'output window, operand 0, single buffered']
    %10 = vsyncpa [#allocation3], 0
    %11 = vsyncpa [#allocation4], 0
    // Predicated region
    $region2: #{tpu_custom_call.1} parent=1 // pred_check
      _
    $region3: #{tpu_custom_call.1} parent=1 // pred_check_branch
      %13 = sbr.rel (0) target = $region5
    $region4: #{tpu_custom_call.1} parent=1 // pred_region
      _
    $region5: #{tpu_custom_call.1} parent=1 // pred_fallthru
      _
    // Predicated region
    $region6: #{tpu_custom_call.1} parent=1 // pred_check
      _
    $region7: #{tpu_custom_call.1} parent=1 // pred_check_branch
      %15 = sbr.rel (0) target = $region9
    $region8: #{tpu_custom_call.1} parent=1 // pred_region
      %17 = vsyncadd [#allocation3], 0
      %s18 = sshll.u32 %s1, 4
      %s19 = int_to_ptr.hbm [resolvable:$true] %s18
      %s20 = sshll.u32 [#allocation2], 4
      %s21 = int_to_ptr.vmem [resolvable:$true] %s20
      %26 = dma.hbm_to_vmem [thread:$0]  %s19, 12544, %s21, [#allocation3], 128, 128, 8
    $region9: #{tpu_custom_call.1} parent=1 // pred_fallthru
      _
    // Predicated region
    $region10: #{tpu_custom_call.1} parent=1 // pred_check
      _
    $region11: #{tpu_custom_call.1} parent=1 // pred_check_branch
      %28 = sbr.rel (0) target = $region13
    $region12: #{tpu_custom_call.1} parent=1 // pred_region
      _
    $region13: #{tpu_custom_call.1} parent=1 // pred_fallthru
      _
    // Predicated region
    $region14: #{tpu_custom_call.1} parent=1 // pred_check
      _
    $region15: #{tpu_custom_call.1} parent=1 // pred_check_branch
      %30 = sbr.rel (0) target = $region17
    $region16: #{tpu_custom_call.1} parent=1 // pred_region
      _
    $region17: #{tpu_custom_call.1} parent=1 // pred_fallthru
      _
    // Predicated region
    $region18: #{tpu_custom_call.1} parent=1 // pred_check
      _
    $region19: #{tpu_custom_call.1} parent=1 // pred_check_branch
      %32 = sbr.rel (0) target = $region21
    $region20: #{tpu_custom_call.1} parent=1 // pred_region
      _
    $region21: #{tpu_custom_call.1} parent=1 // pred_fallthru
      _
    // Predicated region
    $region22: #{tpu_custom_call.1} parent=1 // pred_check
      _
    $region23: #{tpu_custom_call.1} parent=1 // pred_check_branch
      %34 = sbr.rel (0) target = $region25
    $region24: #{tpu_custom_call.1} parent=1 // pred_region
      %36 = dma.done [#allocation3], 12544
    $region25: #{tpu_custom_call.1} parent=1 // pred_fallthru
      _
    %v38 = vld [vmem:[%s0] sm:$0xff]
    %v39 = vld [vmem:[%s0 + $0x8] sm:$0xff]
    %v40 = vld [vmem:[%s0 + $0x10] sm:$0xff]
    %v41 = vld [vmem:[%s0 + $0x18] sm:$0xff]
    %v42 = vld [vmem:[%s0 + $0x20] sm:$0xff]
    %v43 = vld [vmem:[%s0 + $0x28] sm:$0xff]
    %v44 = vld [vmem:[%s0 + $0x30] sm:$0xff]
    %v45 = vpack.c.bf16 %v38, %v38
    %v46 = vpack.c.bf16 %v39, %v39
    %v47 = vpack.c.bf16 %v40, %v40
    %v48 = vpack.c.bf16 %v41, %v41
    %v49 = vpack.c.bf16 %v42, %v42
    %v50 = vpack.c.bf16 %v43, %v43
    %v51 = vpack.c.bf16 %v44, %v44
    %v52 = vld [vmem:[#allocation2] sm:$0xff]
    %v53 = vld [vmem:[#allocation2 + $0x8] sm:$0xff]
    %v54 = vld [vmem:[#allocation2 + $0x10] sm:$0xff]
    %v55 = vld [vmem:[#allocation2 + $0x18] sm:$0xff]
    %v56 = vld [vmem:[#allocation2 + $0x20] sm:$0xff]
    %v57 = vld [vmem:[#allocation2 + $0x28] sm:$0xff]
    %v58 = vld [vmem:[#allocation2 + $0x30] sm:$0xff]
    %v59 = vld [vmem:[#allocation2 + $0x38] sm:$0xff]
    %v60 = vld [vmem:[#allocation2 + $0x40] sm:$0xff]
    %v61 = vld [vmem:[#allocation2 + $0x48] sm:$0xff]
    %v62 = vld [vmem:[#allocation2 + $0x50] sm:$0xff]
    %v63 = vld [vmem:[#allocation2 + $0x58] sm:$0xff]
    %v64 = vld [vmem:[#allocation2 + $0x60] sm:$0xff]
    %v65 = vld [vmem:[#allocation2 + $0x68] sm:$0xff]
    %v66 = vld [vmem:[#allocation2 + $0x70] sm:$0xff]
    %v67 = vld [vmem:[#allocation2 + $0x78] sm:$0xff]
    %v68 = vld [vmem:[#allocation2 + $0x80] sm:$0xff]
    %v69 = vld [vmem:[#allocation2 + $0x88] sm:$0xff]
    %v70 = vld [vmem:[#allocation2 + $0x90] sm:$0xff]
    %v71 = vld [vmem:[#allocation2 + $0x98] sm:$0xff]
    %v72 = vld [vmem:[#allocation2 + $0xa0] sm:$0xff]
    %v73 = vld [vmem:[#allocation2 + $0xa8] sm:$0xff]
    %v74 = vld [vmem:[#allocation2 + $0xb0] sm:$0xff]
    %v75 = vld [vmem:[#allocation2 + $0xb8] sm:$0xff]
    %v76 = vld [vmem:[#allocation2 + $0xc0] sm:$0xff]
    %v77 = vld [vmem:[#allocation2 + $0xc8] sm:$0xff]
    %v78 = vld [vmem:[#allocation2 + $0xd0] sm:$0xff]
    %v79 = vld [vmem:[#allocation2 + $0xd8] sm:$0xff]
    %v80 = vld [vmem:[#allocation2 + $0xe0] sm:$0xff]
    %v81 = vld [vmem:[#allocation2 + $0xe8] sm:$0xff]
    %v82 = vld [vmem:[#allocation2 + $0xf0] sm:$0xff]
    %v83 = vld [vmem:[#allocation2 + $0xf8] sm:$0xff]
    %v84 = vld [vmem:[#allocation2 + $0x100] sm:$0xff]
    %v85 = vld [vmem:[#allocation2 + $0x108] sm:$0xff]
    %v86 = vld [vmem:[#allocation2 + $0x110] sm:$0xff]
    %v87 = vld [vmem:[#allocation2 + $0x118] sm:$0xff]
    %v88 = vld [vmem:[#allocation2 + $0x120] sm:$0xff]
    %v89 = vld [vmem:[#allocation2 + $0x128] sm:$0xff]
    %v90 = vld [vmem:[#allocation2 + $0x130] sm:$0xff]
    %v91 = vld [vmem:[#allocation2 + $0x138] sm:$0xff]
    %v92 = vld [vmem:[#allocation2 + $0x140] sm:$0xff]
    %v93 = vld [vmem:[#allocation2 + $0x148] sm:$0xff]
    %v94 = vld [vmem:[#allocation2 + $0x150] sm:$0xff]
    %v95 = vld [vmem:[#allocation2 + $0x158] sm:$0xff]
    %v96 = vld [vmem:[#allocation2 + $0x160] sm:$0xff]
    %v97 = vld [vmem:[#allocation2 + $0x168] sm:$0xff]
    %v98 = vld [vmem:[#allocation2 + $0x170] sm:$0xff]
    %v99 = vld [vmem:[#allocation2 + $0x178] sm:$0xff]
    %v100 = vld [vmem:[#allocation2 + $0x180] sm:$0xff]
    %v101 = vld [vmem:[#allocation2 + $0x188] sm:$0xff]
    %v102 = vld [vmem:[#allocation2 + $0x190] sm:$0xff]
    %v103 = vld [vmem:[#allocation2 + $0x198] sm:$0xff]
    %v104 = vld [vmem:[#allocation2 + $0x1a0] sm:$0xff]
    %v105 = vld [vmem:[#allocation2 + $0x1a8] sm:$0xff]
    %v106 = vld [vmem:[#allocation2 + $0x1b0] sm:$0xff]
    %v107 = vld [vmem:[#allocation2 + $0x1b8] sm:$0xff]
    %v108 = vld [vmem:[#allocation2 + $0x1c0] sm:$0xff]
    %v109 = vld [vmem:[#allocation2 + $0x1c8] sm:$0xff]
    %v110 = vld [vmem:[#allocation2 + $0x1d0] sm:$0xff]
    %v111 = vld [vmem:[#allocation2 + $0x1d8] sm:$0xff]
    %v112 = vld [vmem:[#allocation2 + $0x1e0] sm:$0xff]
    %v113 = vld [vmem:[#allocation2 + $0x1e8] sm:$0xff]
    %v114 = vld [vmem:[#allocation2 + $0x1f0] sm:$0xff]
    %v115 = vld [vmem:[#allocation2 + $0x1f8] sm:$0xff]
    %v116 = vld [vmem:[#allocation2 + $0x200] sm:$0xff]
    %v117 = vld [vmem:[#allocation2 + $0x208] sm:$0xff]
    %v118 = vld [vmem:[#allocation2 + $0x210] sm:$0xff]
    %v119 = vld [vmem:[#allocation2 + $0x218] sm:$0xff]
    %v120 = vld [vmem:[#allocation2 + $0x220] sm:$0xff]
    %v121 = vld [vmem:[#allocation2 + $0x228] sm:$0xff]
    %v122 = vld [vmem:[#allocation2 + $0x230] sm:$0xff]
    %v123 = vld [vmem:[#allocation2 + $0x238] sm:$0xff]
    %v124 = vld [vmem:[#allocation2 + $0x240] sm:$0xff]
    %v125 = vld [vmem:[#allocation2 + $0x248] sm:$0xff]
    %v126 = vld [vmem:[#allocation2 + $0x250] sm:$0xff]
    %v127 = vld [vmem:[#allocation2 + $0x258] sm:$0xff]
    %v128 = vld [vmem:[#allocation2 + $0x260] sm:$0xff]
    %v129 = vld [vmem:[#allocation2 + $0x268] sm:$0xff]
    %v130 = vld [vmem:[#allocation2 + $0x270] sm:$0xff]
    %v131 = vld [vmem:[#allocation2 + $0x278] sm:$0xff]
    %v132 = vld [vmem:[#allocation2 + $0x280] sm:$0xff]
    %v133 = vld [vmem:[#allocation2 + $0x288] sm:$0xff]
    %v134 = vld [vmem:[#allocation2 + $0x290] sm:$0xff]
    %v135 = vld [vmem:[#allocation2 + $0x298] sm:$0xff]
    %v136 = vld [vmem:[#allocation2 + $0x2a0] sm:$0xff]
    %v137 = vld [vmem:[#allocation2 + $0x2a8] sm:$0xff]
    %v138 = vld [vmem:[#allocation2 + $0x2b0] sm:$0xff]
    %v139 = vld [vmem:[#allocation2 + $0x2b8] sm:$0xff]
    %v140 = vld [vmem:[#allocation2 + $0x2c0] sm:$0xff]
    %v141 = vld [vmem:[#allocation2 + $0x2c8] sm:$0xff]
    %v142 = vld [vmem:[#allocation2 + $0x2d0] sm:$0xff]
    %v143 = vld [vmem:[#allocation2 + $0x2d8] sm:$0xff]
    %v144 = vld [vmem:[#allocation2 + $0x2e0] sm:$0xff]
    %v145 = vld [vmem:[#allocation2 + $0x2e8] sm:$0xff]
    %v146 = vld [vmem:[#allocation2 + $0x2f0] sm:$0xff]
    %v147 = vld [vmem:[#allocation2 + $0x2f8] sm:$0xff]
    %v148 = vld [vmem:[#allocation2 + $0x300] sm:$0xff]
    %v149 = vld [vmem:[#allocation2 + $0x308] sm:$0xff]
    %v150 = vld [vmem:[%s2] sm:$0x3]
    %v152 = vperm.slane %v150, 0
    %v153 = vperm.slane %v150, 1
    %v254 = vunpack.c.l.b16 %v52
    %v255 = vunpack.c.h.b16 %v52
    %v256 = vunpack.c.l.b16 %v53
    %v257 = vunpack.c.h.b16 %v53
    %v258 = vunpack.c.l.b16 %v54
    %v259 = vunpack.c.h.b16 %v54
    %v260 = vunpack.c.l.b16 %v55
    %v261 = vunpack.c.h.b16 %v55
    %v262 = vunpack.c.l.b16 %v56
    %v263 = vunpack.c.h.b16 %v56
    %v264 = vunpack.c.l.b16 %v57
    %v265 = vunpack.c.h.b16 %v57
    %v266 = vunpack.c.l.b16 %v58
    %v267 = vunpack.c.h.b16 %v58
    %v268 = vunpack.c.l.b16 %v59
    %v269 = vunpack.c.h.b16 %v59
    %v270 = vunpack.c.l.b16 %v60
    %v271 = vunpack.c.h.b16 %v60
    %v272 = vunpack.c.l.b16 %v61
    %v273 = vunpack.c.h.b16 %v61
    %v274 = vunpack.c.l.b16 %v62
    %v275 = vunpack.c.h.b16 %v62
    %v276 = vunpack.c.l.b16 %v63
    %v277 = vunpack.c.h.b16 %v63
    %v278 = vunpack.c.l.b16 %v64
    %v279 = vunpack.c.h.b16 %v64
    %v280 = vunpack.c.l.b16 %v65
    %v281 = vunpack.c.h.b16 %v65
    %v282 = vunpack.c.l.b16 %v66
    %v283 = vunpack.c.h.b16 %v66
    %v284 = vunpack.c.l.b16 %v67
    %v285 = vunpack.c.h.b16 %v67
    %v286 = vunpack.c.l.b16 %v68
    %v287 = vunpack.c.h.b16 %v68
    %v288 = vunpack.c.l.b16 %v69
    %v289 = vunpack.c.h.b16 %v69
    %v290 = vunpack.c.l.b16 %v70
    %v291 = vunpack.c.h.b16 %v70
    %v292 = vunpack.c.l.b16 %v71
    %v293 = vunpack.c.h.b16 %v71
    %v294 = vunpack.c.l.b16 %v72
    %v295 = vunpack.c.h.b16 %v72
    %v296 = vunpack.c.l.b16 %v73
    %v297 = vunpack.c.h.b16 %v73
    %v298 = vunpack.c.l.b16 %v74
    %v299 = vunpack.c.h.b16 %v74
    %v300 = vunpack.c.l.b16 %v75
    %v301 = vunpack.c.h.b16 %v75
    %v302 = vunpack.c.l.b16 %v76
    %v303 = vunpack.c.h.b16 %v76
    %v304 = vunpack.c.l.b16 %v77
    %v305 = vunpack.c.h.b16 %v77
    %v306 = vunpack.c.l.b16 %v78
    %v307 = vunpack.c.h.b16 %v78
    %v308 = vunpack.c.l.b16 %v79
    %v309 = vunpack.c.h.b16 %v79
    %v310 = vunpack.c.l.b16 %v80
    %v311 = vunpack.c.h.b16 %v80
    %v312 = vunpack.c.l.b16 %v81
    %v313 = vunpack.c.h.b16 %v81
    %v314 = vunpack.c.l.b16 %v82
    %v315 = vunpack.c.h.b16 %v82
    %v316 = vunpack.c.l.b16 %v83
    %v317 = vunpack.c.h.b16 %v83
    %v318 = vunpack.c.l.b16 %v84
    %v319 = vunpack.c.h.b16 %v84
    %v320 = vunpack.c.l.b16 %v85
    %v321 = vunpack.c.h.b16 %v85
    %v322 = vunpack.c.l.b16 %v86
    %v323 = vunpack.c.h.b16 %v86
    %v324 = vunpack.c.l.b16 %v87
    %v325 = vunpack.c.h.b16 %v87
    %v326 = vunpack.c.l.b16 %v88
    %v327 = vunpack.c.h.b16 %v88
    %v328 = vunpack.c.l.b16 %v89
    %v329 = vunpack.c.h.b16 %v89
    %v330 = vunpack.c.l.b16 %v90
    %v331 = vunpack.c.h.b16 %v90
    %v332 = vunpack.c.l.b16 %v91
    %v333 = vunpack.c.h.b16 %v91
    %v334 = vunpack.c.l.b16 %v92
    %v335 = vunpack.c.h.b16 %v92
    %v336 = vunpack.c.l.b16 %v93
    %v337 = vunpack.c.h.b16 %v93
    %v338 = vunpack.c.l.b16 %v94
    %v339 = vunpack.c.h.b16 %v94
    %v340 = vunpack.c.l.b16 %v95
    %v341 = vunpack.c.h.b16 %v95
    %v342 = vunpack.c.l.b16 %v96
    %v343 = vunpack.c.h.b16 %v96
    %v344 = vunpack.c.l.b16 %v97
    %v345 = vunpack.c.h.b16 %v97
    %v346 = vunpack.c.l.b16 %v98
    %v347 = vunpack.c.h.b16 %v98
    %v348 = vunpack.c.l.b16 %v99
    %v349 = vunpack.c.h.b16 %v99
    %v350 = vunpack.c.l.b16 %v100
    %v351 = vunpack.c.h.b16 %v100
    %v352 = vunpack.c.l.b16 %v101
    %v353 = vunpack.c.h.b16 %v101
    %v354 = vunpack.c.l.b16 %v102
    %v355 = vunpack.c.h.b16 %v102
    %v356 = vunpack.c.l.b16 %v103
    %v357 = vunpack.c.h.b16 %v103
    %v358 = vunpack.c.l.b16 %v104
    %v359 = vunpack.c.h.b16 %v104
    %v360 = vunpack.c.l.b16 %v105
    %v361 = vunpack.c.h.b16 %v105
    %v362 = vunpack.c.l.b16 %v106
    %v363 = vunpack.c.h.b16 %v106
    %v364 = vunpack.c.l.b16 %v107
    %v365 = vunpack.c.h.b16 %v107
    %v366 = vunpack.c.l.b16 %v108
    %v367 = vunpack.c.h.b16 %v108
    %v368 = vunpack.c.l.b16 %v109
    %v369 = vunpack.c.h.b16 %v109
    %v370 = vunpack.c.l.b16 %v110
    %v371 = vunpack.c.h.b16 %v110
    %v372 = vunpack.c.l.b16 %v111
    %v373 = vunpack.c.h.b16 %v111
    %v374 = vunpack.c.l.b16 %v112
    %v375 = vunpack.c.h.b16 %v112
    %v376 = vunpack.c.l.b16 %v113
    %v377 = vunpack.c.h.b16 %v113
    %v378 = vunpack.c.l.b16 %v114
    %v379 = vunpack.c.h.b16 %v114
    %v380 = vunpack.c.l.b16 %v115
    %v381 = vunpack.c.h.b16 %v115
    %v382 = vunpack.c.l.b16 %v116
    %v383 = vunpack.c.h.b16 %v116
    %v384 = vunpack.c.l.b16 %v117
    %v385 = vunpack.c.h.b16 %v117
    %v386 = vunpack.c.l.b16 %v118
    %v387 = vunpack.c.h.b16 %v118
    %v388 = vunpack.c.l.b16 %v119
    %v389 = vunpack.c.h.b16 %v119
    %v390 = vunpack.c.l.b16 %v120
    %v391 = vunpack.c.h.b16 %v120
    %v392 = vunpack.c.l.b16 %v121
    %v393 = vunpack.c.h.b16 %v121
    %v394 = vunpack.c.l.b16 %v122
    %v395 = vunpack.c.h.b16 %v122
    %v396 = vunpack.c.l.b16 %v123
    %v397 = vunpack.c.h.b16 %v123
    %v398 = vunpack.c.l.b16 %v124
    %v399 = vunpack.c.h.b16 %v124
    %v400 = vunpack.c.l.b16 %v125
    %v401 = vunpack.c.h.b16 %v125
    %v402 = vunpack.c.l.b16 %v126
    %v403 = vunpack.c.h.b16 %v126
    %v404 = vunpack.c.l.b16 %v127
    %v405 = vunpack.c.h.b16 %v127
    %v406 = vunpack.c.l.b16 %v128
    %v407 = vunpack.c.h.b16 %v128
    %v408 = vunpack.c.l.b16 %v129
    %v409 = vunpack.c.h.b16 %v129
    %v410 = vunpack.c.l.b16 %v130
    %v411 = vunpack.c.h.b16 %v130
    %v412 = vunpack.c.l.b16 %v131
    %v413 = vunpack.c.h.b16 %v131
    %v414 = vunpack.c.l.b16 %v132
    %v415 = vunpack.c.h.b16 %v132
    %v416 = vunpack.c.l.b16 %v133
    %v417 = vunpack.c.h.b16 %v133
    %v418 = vunpack.c.l.b16 %v134
    %v419 = vunpack.c.h.b16 %v134
    %v420 = vunpack.c.l.b16 %v135
    %v421 = vunpack.c.h.b16 %v135
    %v422 = vunpack.c.l.b16 %v136
    %v423 = vunpack.c.h.b16 %v136
    %v424 = vunpack.c.l.b16 %v137
    %v425 = vunpack.c.h.b16 %v137
    %v426 = vunpack.c.l.b16 %v138
    %v427 = vunpack.c.h.b16 %v138
    %v428 = vunpack.c.l.b16 %v139
    %v429 = vunpack.c.h.b16 %v139
    %v430 = vunpack.c.l.b16 %v140
    %v431 = vunpack.c.h.b16 %v140
    %v432 = vunpack.c.l.b16 %v141
    %v433 = vunpack.c.h.b16 %v141
    %v434 = vunpack.c.l.b16 %v142
    %v435 = vunpack.c.h.b16 %v142
    %v436 = vunpack.c.l.b16 %v143
    %v437 = vunpack.c.h.b16 %v143
    %v438 = vunpack.c.l.b16 %v144
    %v439 = vunpack.c.h.b16 %v144
    %v440 = vunpack.c.l.b16 %v145
    %v441 = vunpack.c.h.b16 %v145
    %v442 = vunpack.c.l.b16 %v146
    %v443 = vunpack.c.h.b16 %v146
    %v444 = vunpack.c.l.b16 %v147
    %v445 = vunpack.c.h.b16 %v147
    %v446 = vunpack.c.l.b16 %v148
    %v447 = vunpack.c.h.b16 %v148
    %v448 = vunpack.c.l.b16 %v149
    %v449 = vunpack.c.h.b16 %v149
    %v450 = vpack.c.b16 %v256, %v254
    %v451 = vpack.c.b16 %v257, %v255
    %v452 = vpack.c.b16 %v260, %v258
    %v453 = vpack.c.b16 %v261, %v259
    %v454 = vpack.c.b16 %v264, %v262
    %v455 = vpack.c.b16 %v265, %v263
    %v456 = vpack.c.b16 %v268, %v266
    %v457 = vpack.c.b16 %v269, %v267
    %v458 = vpack.c.b16 %v272, %v270
    %v459 = vpack.c.b16 %v273, %v271
    %v460 = vpack.c.b16 %v276, %v274
    %v461 = vpack.c.b16 %v277, %v275
    %v462 = vpack.c.b16 %v280, %v278
    %v463 = vpack.c.b16 %v281, %v279
    %v464 = vpack.c.b16 %v284, %v282
    %v465 = vpack.c.b16 %v285, %v283
    %v466 = vpack.c.b16 %v288, %v286
    %v467 = vpack.c.b16 %v289, %v287
    %v468 = vpack.c.b16 %v292, %v290
    %v469 = vpack.c.b16 %v293, %v291
    %v470 = vpack.c.b16 %v296, %v294
    %v471 = vpack.c.b16 %v297, %v295
    %v472 = vpack.c.b16 %v300, %v298
    %v473 = vpack.c.b16 %v301, %v299
    %v474 = vpack.c.b16 %v304, %v302
    %v475 = vpack.c.b16 %v305, %v303
    %v476 = vpack.c.b16 %v308, %v306
    %v477 = vpack.c.b16 %v309, %v307
    %v478 = vpack.c.b16 %v312, %v310
    %v479 = vpack.c.b16 %v313, %v311
    %v480 = vpack.c.b16 %v316, %v314
    %v481 = vpack.c.b16 %v317, %v315
    %v482 = vpack.c.b16 %v320, %v318
    %v483 = vpack.c.b16 %v321, %v319
    %v484 = vpack.c.b16 %v324, %v322
    %v485 = vpack.c.b16 %v325, %v323
    %v486 = vpack.c.b16 %v328, %v326
    %v487 = vpack.c.b16 %v329, %v327
    %v488 = vpack.c.b16 %v332, %v330
    %v489 = vpack.c.b16 %v333, %v331
    %v490 = vpack.c.b16 %v336, %v334
    %v491 = vpack.c.b16 %v337, %v335
    %v492 = vpack.c.b16 %v340, %v338
    %v493 = vpack.c.b16 %v341, %v339
    %v494 = vpack.c.b16 %v344, %v342
    %v495 = vpack.c.b16 %v345, %v343
    %v496 = vpack.c.b16 %v348, %v346
    %v497 = vpack.c.b16 %v349, %v347
    %v498 = vpack.c.b16 %v352, %v350
    %v499 = vpack.c.b16 %v353, %v351
    %v500 = vpack.c.b16 %v356, %v354
    %v501 = vpack.c.b16 %v357, %v355
    %v502 = vpack.c.b16 %v360, %v358
    %v503 = vpack.c.b16 %v361, %v359
    %v504 = vpack.c.b16 %v364, %v362
    %v505 = vpack.c.b16 %v365, %v363
    %v506 = vpack.c.b16 %v368, %v366
    %v507 = vpack.c.b16 %v369, %v367
    %v508 = vpack.c.b16 %v372, %v370
    %v509 = vpack.c.b16 %v373, %v371
    %v510 = vpack.c.b16 %v376, %v374
    %v511 = vpack.c.b16 %v377, %v375
    %v512 = vpack.c.b16 %v380, %v378
    %v513 = vpack.c.b16 %v381, %v379
    %v514 = vpack.c.b16 %v384, %v382
    %v515 = vpack.c.b16 %v385, %v383
    %v516 = vpack.c.b16 %v388, %v386
    %v517 = vpack.c.b16 %v389, %v387
    %v518 = vpack.c.b16 %v392, %v390
    %v519 = vpack.c.b16 %v393, %v391
    %v520 = vpack.c.b16 %v396, %v394
    %v521 = vpack.c.b16 %v397, %v395
    %v522 = vpack.c.b16 %v400, %v398
    %v523 = vpack.c.b16 %v401, %v399
    %v524 = vpack.c.b16 %v404, %v402
    %v525 = vpack.c.b16 %v405, %v403
    %v526 = vpack.c.b16 %v408, %v406
    %v527 = vpack.c.b16 %v409, %v407
    %v528 = vpack.c.b16 %v412, %v410
    %v529 = vpack.c.b16 %v413, %v411
    %v530 = vpack.c.b16 %v416, %v414
    %v531 = vpack.c.b16 %v417, %v415
    %v532 = vpack.c.b16 %v420, %v418
    %v533 = vpack.c.b16 %v421, %v419
    %v534 = vpack.c.b16 %v424, %v422
    %v535 = vpack.c.b16 %v425, %v423
    %v536 = vpack.c.b16 %v428, %v426
    %v537 = vpack.c.b16 %v429, %v427
    %v538 = vpack.c.b16 %v432, %v430
    %v539 = vpack.c.b16 %v433, %v431
    %v540 = vpack.c.b16 %v436, %v434
    %v541 = vpack.c.b16 %v437, %v435
    %v542 = vpack.c.b16 %v440, %v438
    %v543 = vpack.c.b16 %v441, %v439
    %v544 = vpack.c.b16 %v444, %v442
    %v545 = vpack.c.b16 %v445, %v443
    %v546 = vpack.c.b16 %v448, %v446
    %v547 = vpack.c.b16 %v449, %v447
    %vm646 = vcmask 130048
    %v648 = vsel %vm646, %v51, 0
    %650 = vmatpush.bf16.msra.mxu0 %v464
    %651 = vmatpush.bf16.msra.mxu0 %v462
    %652 = vmatpush.bf16.msra.mxu0 %v460
    %653 = vmatpush.bf16.msra.mxu0 %v458
    %654 = vmatpush.bf16.msra.mxu0 %v456
    %655 = vmatpush.bf16.msra.mxu0 %v454
    %656 = vmatpush.bf16.msra.mxu0 %v452
    %657 = vmatpush.bf16.msra.mxu0 %v450
    %658 = vmatmul.bf16.gmra.mxu0 %v45
    %v659 = vpop.f32.mrf.mxu0
    %v660 = vadd.f32 %v152, %v659
    %v661 = vpop.f32.mrf.mxu0
    %662 = vdwg.mxu0
    %663 = vmatpush.bf16.msra.mxu0 %v480
    %664 = vmatpush.bf16.msra.mxu0 %v478
    %665 = vmatpush.bf16.msra.mxu0 %v476
    %666 = vmatpush.bf16.msra.mxu0 %v474
    %667 = vmatpush.bf16.msra.mxu0 %v472
    %668 = vmatpush.bf16.msra.mxu0 %v470
    %669 = vmatpush.bf16.msra.mxu0 %v468
    %670 = vmatpush.bf16.msra.mxu0 %v466
    %671 = vmatmul.bf16.gmra.mxu0 %v46
    %v672 = vpop.f32.mrf.mxu0
    %v673 = vadd.f32 %v660, %v672
    %v674 = vpop.f32.mrf.mxu0
    %675 = vdwg.mxu0
    %676 = vmatpush.bf16.msra.mxu0 %v496
    %677 = vmatpush.bf16.msra.mxu0 %v494
    %678 = vmatpush.bf16.msra.mxu0 %v492
    %679 = vmatpush.bf16.msra.mxu0 %v490
    %680 = vmatpush.bf16.msra.mxu0 %v488
    %681 = vmatpush.bf16.msra.mxu0 %v486
    %682 = vmatpush.bf16.msra.mxu0 %v484
    %683 = vmatpush.bf16.msra.mxu0 %v482
    %684 = vmatmul.bf16.gmra.mxu0 %v47
    %v685 = vpop.f32.mrf.mxu0
    %v686 = vadd.f32 %v673, %v685
    %v687 = vpop.f32.mrf.mxu0
    %688 = vdwg.mxu0
    %689 = vmatpush.bf16.msra.mxu0 %v512
    %690 = vmatpush.bf16.msra.mxu0 %v510
    %691 = vmatpush.bf16.msra.mxu0 %v508
    %692 = vmatpush.bf16.msra.mxu0 %v506
    %693 = vmatpush.bf16.msra.mxu0 %v504
    %694 = vmatpush.bf16.msra.mxu0 %v502
    %695 = vmatpush.bf16.msra.mxu0 %v500
    %696 = vmatpush.bf16.msra.mxu0 %v498
    %697 = vmatmul.bf16.gmra.mxu0 %v48
    %v698 = vpop.f32.mrf.mxu0
    %v699 = vadd.f32 %v686, %v698
    %v700 = vpop.f32.mrf.mxu0
    %701 = vdwg.mxu0
    %702 = vmatpush.bf16.msra.mxu0 %v528
    %703 = vmatpush.bf16.msra.mxu0 %v526
    %704 = vmatpush.bf16.msra.mxu0 %v524
    %705 = vmatpush.bf16.msra.mxu0 %v522
    %706 = vmatpush.bf16.msra.mxu0 %v520
    %707 = vmatpush.bf16.msra.mxu0 %v518
    %708 = vmatpush.bf16.msra.mxu0 %v516
    %709 = vmatpush.bf16.msra.mxu0 %v514
    %710 = vmatmul.bf16.gmra.mxu0 %v49
    %v711 = vpop.f32.mrf.mxu0
    %v712 = vadd.f32 %v699, %v711
    %v713 = vpop.f32.mrf.mxu0
    %714 = vdwg.mxu0
    %715 = vmatpush.bf16.msra.mxu0 %v544
    %716 = vmatpush.bf16.msra.mxu0 %v542
    %717 = vmatpush.bf16.msra.mxu0 %v540
    %718 = vmatpush.bf16.msra.mxu0 %v538
    %719 = vmatpush.bf16.msra.mxu0 %v536
    %720 = vmatpush.bf16.msra.mxu0 %v534
    %721 = vmatpush.bf16.msra.mxu0 %v532
    %722 = vmatpush.bf16.msra.mxu0 %v530
    %723 = vmatmul.bf16.gmra.mxu0 %v50
    %v724 = vpop.f32.mrf.mxu0
    %v725 = vadd.f32 %v712, %v724
    %v726 = vpop.f32.mrf.mxu0
    %727 = vdwg.mxu0
    %728 = vmatpush.bf16.msra.mxu0 0
    %729 = vmatpush.bf16.msra.mxu0 0
    %730 = vmatpush.bf16.msra.mxu0 0
    %731 = vmatpush.bf16.msra.mxu0 0
    %732 = vmatpush.bf16.msra.mxu0 0
    %733 = vmatpush.bf16.msra.mxu0 0
    %734 = vmatpush.bf16.msra.mxu0 0
    %735 = vmatpush.bf16.msra.mxu0 %v546
    %736 = vmatmul.bf16.gmra.mxu0 %v648
    %v737 = vpop.f32.mrf.mxu0
    %v738 = vadd.f32 %v725, %v737
    %v739 = vpop.f32.mrf.mxu0
    %740 = vdwg.mxu0
    %741 = vmatpush.bf16.msra.mxu0 %v465
    %742 = vmatpush.bf16.msra.mxu0 %v463
    %743 = vmatpush.bf16.msra.mxu0 %v461
    %744 = vmatpush.bf16.msra.mxu0 %v459
    %745 = vmatpush.bf16.msra.mxu0 %v457
    %746 = vmatpush.bf16.msra.mxu0 %v455
    %747 = vmatpush.bf16.msra.mxu0 %v453
    %748 = vmatpush.bf16.msra.mxu0 %v451
    %749 = vmatmul.bf16.gmra.mxu0 %v45
    %v750 = vpop.f32.mrf.mxu0
    %v751 = vadd.f32 %v153, %v750
    %v752 = vpop.f32.mrf.mxu0
    %753 = vdwg.mxu0
    %754 = vmatpush.bf16.msra.mxu0 %v481
    %755 = vmatpush.bf16.msra.mxu0 %v479
    %756 = vmatpush.bf16.msra.mxu0 %v477
    %757 = vmatpush.bf16.msra.mxu0 %v475
    %758 = vmatpush.bf16.msra.mxu0 %v473
    %759 = vmatpush.bf16.msra.mxu0 %v471
    %760 = vmatpush.bf16.msra.mxu0 %v469
    %761 = vmatpush.bf16.msra.mxu0 %v467
    %762 = vmatmul.bf16.gmra.mxu0 %v46
    %v763 = vpop.f32.mrf.mxu0
    %v764 = vadd.f32 %v751, %v763
    %v765 = vpop.f32.mrf.mxu0
    %766 = vdwg.mxu0
    %767 = vmatpush.bf16.msra.mxu0 %v497
    %768 = vmatpush.bf16.msra.mxu0 %v495
    %769 = vmatpush.bf16.msra.mxu0 %v493
    %770 = vmatpush.bf16.msra.mxu0 %v491
    %771 = vmatpush.bf16.msra.mxu0 %v489
    %772 = vmatpush.bf16.msra.mxu0 %v487
    %773 = vmatpush.bf16.msra.mxu0 %v485
    %774 = vmatpush.bf16.msra.mxu0 %v483
    %775 = vmatmul.bf16.gmra.mxu0 %v47
    %v776 = vpop.f32.mrf.mxu0
    %v777 = vadd.f32 %v764, %v776
    %v778 = vpop.f32.mrf.mxu0
    %779 = vdwg.mxu0
    %780 = vmatpush.bf16.msra.mxu0 %v513
    %781 = vmatpush.bf16.msra.mxu0 %v511
    %782 = vmatpush.bf16.msra.mxu0 %v509
    %783 = vmatpush.bf16.msra.mxu0 %v507
    %784 = vmatpush.bf16.msra.mxu0 %v505
    %785 = vmatpush.bf16.msra.mxu0 %v503
    %786 = vmatpush.bf16.msra.mxu0 %v501
    %787 = vmatpush.bf16.msra.mxu0 %v499
    %788 = vmatmul.bf16.gmra.mxu0 %v48
    %v789 = vpop.f32.mrf.mxu0
    %v790 = vadd.f32 %v777, %v789
    %v791 = vpop.f32.mrf.mxu0
    %792 = vdwg.mxu0
    %793 = vmatpush.bf16.msra.mxu0 %v529
    %794 = vmatpush.bf16.msra.mxu0 %v527
    %795 = vmatpush.bf16.msra.mxu0 %v525
    %796 = vmatpush.bf16.msra.mxu0 %v523
    %797 = vmatpush.bf16.msra.mxu0 %v521
    %798 = vmatpush.bf16.msra.mxu0 %v519
    %799 = vmatpush.bf16.msra.mxu0 %v517
    %800 = vmatpush.bf16.msra.mxu0 %v515
    %801 = vmatmul.bf16.gmra.mxu0 %v49
    %v802 = vpop.f32.mrf.mxu0
    %v803 = vadd.f32 %v790, %v802
    %v804 = vpop.f32.mrf.mxu0
    %805 = vdwg.mxu0
    %806 = vmatpush.bf16.msra.mxu0 %v545
    %807 = vmatpush.bf16.msra.mxu0 %v543
    %808 = vmatpush.bf16.msra.mxu0 %v541
    %809 = vmatpush.bf16.msra.mxu0 %v539
    %810 = vmatpush.bf16.msra.mxu0 %v537
    %811 = vmatpush.bf16.msra.mxu0 %v535
    %812 = vmatpush.bf16.msra.mxu0 %v533
    %813 = vmatpush.bf16.msra.mxu0 %v531
    %814 = vmatmul.bf16.gmra.mxu0 %v50
    %v815 = vpop.f32.mrf.mxu0
    %v816 = vadd.f32 %v803, %v815
    %v817 = vpop.f32.mrf.mxu0
    %818 = vdwg.mxu0
    %819 = vmatpush.bf16.msra.mxu0 0
    %820 = vmatpush.bf16.msra.mxu0 0
    %821 = vmatpush.bf16.msra.mxu0 0
    %822 = vmatpush.bf16.msra.mxu0 0
    %823 = vmatpush.bf16.msra.mxu0 0
    %824 = vmatpush.bf16.msra.mxu0 0
    %825 = vmatpush.bf16.msra.mxu0 0
    %826 = vmatpush.bf16.msra.mxu0 %v547
    %827 = vmatmul.bf16.gmra.mxu0 %v648
    %v828 = vpop.f32.mrf.mxu0
    %v829 = vadd.f32 %v816, %v828
    %v830 = vpop.f32.mrf.mxu0
    %831 = vdwg.mxu0
    %v832 = vmul.f32 %v738, 0.5
    %v833 = vmul.f32 %v829, 0.5
    %v834 = vtanh.pop %v832
    %v835 = vtanh.pop %v833
    %v836 = vadd.f32 %v834, 1.0
    %v837 = vadd.f32 %v835, 1.0
    %v838 = vmul.f32 %v836, 0.5
    %v839 = vmul.f32 %v837, 0.5
    %v840 = vpack.c.bf16 %v838, %v838
    %v841 = vpack.c.bf16 %v839, %v839
    %v842 = vld [vmem:[%s3] sm:$0xf]
    %v843 = vld [vmem:[%s3 + $0x4] sm:$0xf]
    %v844 = vld [vmem:[%s3 + $0x8] sm:$0xf]
    %v845 = vld [vmem:[%s3 + $0xc] sm:$0xf]
    %v846 = vld [vmem:[%s3 + $0x10] sm:$0xf]
    %v847 = vld [vmem:[%s3 + $0x14] sm:$0xf]
    %v848 = vld [vmem:[%s3 + $0x18] sm:$0xf]
    %v849 = vld [vmem:[%s3 + $0x1c] sm:$0xf]
    %v850 = vld [vmem:[%s3 + $0x20] sm:$0xf]
    %v851 = vld [vmem:[%s3 + $0x24] sm:$0xf]
    %v852 = vld [vmem:[%s3 + $0x28] sm:$0xf]
    %v853 = vld [vmem:[%s3 + $0x2c] sm:$0xf]
    %v854 = vld [vmem:[%s3 + $0x30] sm:$0xf]
    %v855 = vld [vmem:[%s3 + $0x34] sm:$0xf]
    %v856 = vld [vmem:[%s3 + $0x38] sm:$0xf]
    %v857 = vld [vmem:[%s3 + $0x3c] sm:$0xf]
    %v858 = vld [vmem:[%s3 + $0x40] sm:$0xf]
    %v859 = vld [vmem:[%s3 + $0x44] sm:$0xf]
    %v860 = vld [vmem:[%s3 + $0x48] sm:$0xf]
    %v861 = vld [vmem:[%s3 + $0x4c] sm:$0xf]
    %v862 = vld [vmem:[%s3 + $0x50] sm:$0xf]
    %v863 = vld [vmem:[%s3 + $0x54] sm:$0xf]
    %v864 = vld [vmem:[%s3 + $0x58] sm:$0xf]
    %v865 = vld [vmem:[%s3 + $0x5c] sm:$0xf]
    %v866 = vld [vmem:[%s3 + $0x60] sm:$0xf]
    %v867 = vld [vmem:[%s3 + $0x64] sm:$0xf]
    %v868 = vld [vmem:[%s3 + $0x68] sm:$0xf]
    %v869 = vld [vmem:[%s3 + $0x6c] sm:$0xf]
    %v870 = vld [vmem:[%s3 + $0x70] sm:$0xf]
    %v871 = vld [vmem:[%s3 + $0x74] sm:$0xf]
    %v872 = vld [vmem:[%s3 + $0x78] sm:$0xf]
    %v873 = vld [vmem:[%s3 + $0x7c] sm:$0xf]
    %v874 = vld [vmem:[%s4] sm:$0x1]
    %v876 = vperm.slane %v874, 0
    %v910 = vunpack.c.l.b16 %v842
    %v911 = vunpack.c.l.b16 %v843
    %v912 = vunpack.c.l.b16 %v844
    %v913 = vunpack.c.l.b16 %v845
    %v914 = vunpack.c.l.b16 %v846
    %v915 = vunpack.c.l.b16 %v847
    %v916 = vunpack.c.l.b16 %v848
    %v917 = vunpack.c.l.b16 %v849
    %v918 = vunpack.c.l.b16 %v850
    %v919 = vunpack.c.l.b16 %v851
    %v920 = vunpack.c.l.b16 %v852
    %v921 = vunpack.c.l.b16 %v853
    %v922 = vunpack.c.l.b16 %v854
    %v923 = vunpack.c.l.b16 %v855
    %v924 = vunpack.c.l.b16 %v856
    %v925 = vunpack.c.l.b16 %v857
    %v926 = vunpack.c.l.b16 %v858
    %v927 = vunpack.c.l.b16 %v859
    %v928 = vunpack.c.l.b16 %v860
    %v929 = vunpack.c.l.b16 %v861
    %v930 = vunpack.c.l.b16 %v862
    %v931 = vunpack.c.l.b16 %v863
    %v932 = vunpack.c.l.b16 %v864
    %v933 = vunpack.c.l.b16 %v865
    %v934 = vunpack.c.l.b16 %v866
    %v935 = vunpack.c.l.b16 %v867
    %v936 = vunpack.c.l.b16 %v868
    %v937 = vunpack.c.l.b16 %v869
    %v938 = vunpack.c.l.b16 %v870
    %v939 = vunpack.c.l.b16 %v871
    %v940 = vunpack.c.l.b16 %v872
    %v941 = vunpack.c.l.b16 %v873
    %v942 = vpack.c.b16 %v911, %v910
    %v943 = vpack.c.b16 %v913, %v912
    %v944 = vpack.c.b16 %v915, %v914
    %v945 = vpack.c.b16 %v917, %v916
    %v946 = vpack.c.b16 %v919, %v918
    %v947 = vpack.c.b16 %v921, %v920
    %v948 = vpack.c.b16 %v923, %v922
    %v949 = vpack.c.b16 %v925, %v924
    %v950 = vpack.c.b16 %v927, %v926
    %v951 = vpack.c.b16 %v929, %v928
    %v952 = vpack.c.b16 %v931, %v930
    %v953 = vpack.c.b16 %v933, %v932
    %v954 = vpack.c.b16 %v935, %v934
    %v955 = vpack.c.b16 %v937, %v936
    %v956 = vpack.c.b16 %v939, %v938
    %v957 = vpack.c.b16 %v941, %v940
    %974 = vmatpush.bf16.msra.mxu0 %v949
    %975 = vmatpush.bf16.msra.mxu0 %v948
    %976 = vmatpush.bf16.msra.mxu0 %v947
    %977 = vmatpush.bf16.msra.mxu0 %v946
    %978 = vmatpush.bf16.msra.mxu0 %v945
    %979 = vmatpush.bf16.msra.mxu0 %v944
    %980 = vmatpush.bf16.msra.mxu0 %v943
    %981 = vmatpush.bf16.msra.mxu0 %v942
    %982 = vmatmul.bf16.gmra.mxu0 %v840
    %v983 = vpop.f32.mrf.mxu0
    %v984 = vadd.f32 %v876, %v983
    %v985 = vpop.f32.mrf.mxu0
    %986 = vdwg.mxu0
    %987 = vmatpush.bf16.msra.mxu0 %v957
    %988 = vmatpush.bf16.msra.mxu0 %v956
    %989 = vmatpush.bf16.msra.mxu0 %v955
    %990 = vmatpush.bf16.msra.mxu0 %v954
    %991 = vmatpush.bf16.msra.mxu0 %v953
    %992 = vmatpush.bf16.msra.mxu0 %v952
    %993 = vmatpush.bf16.msra.mxu0 %v951
    %994 = vmatpush.bf16.msra.mxu0 %v950
    %995 = vmatmul.bf16.gmra.mxu0 %v841
    %v996 = vpop.f32.mrf.mxu0
    %v997 = vadd.f32 %v984, %v996
    %v998 = vpop.f32.mrf.mxu0
    %999 = vdwg.mxu0
    %vm1000 = vcmask 80896
    %1001 = vst.msk [vmem:[#allocation5] sm:$0xff] %vm1000, %v997
    // Predicated region
    $region26: #{tpu_custom_call.1} parent=1 // pred_check
      _
    $region27: #{tpu_custom_call.1} parent=1 // pred_check_branch
      %1003 = sbr.rel (0) target = $region29
    $region28: #{tpu_custom_call.1} parent=1 // pred_region
      %1005 = vsyncadd [#allocation4], 0
      %s1007 = sshll.u32 [#allocation5], 4
      %s1008 = int_to_ptr.vmem [resolvable:$true] %s1007
      %s1009 = sshll.u32 %s5, 4
      %s1010 = int_to_ptr.hbm [resolvable:$true] %s1009
      %1012 = dma.vmem_to_hbm [thread:$0]  %s1008, 128, %s1010, [#allocation4]
    $region29: #{tpu_custom_call.1} parent=1 // pred_fallthru
      _
    // Predicated region
    $region30: #{tpu_custom_call.1} parent=1 // pred_check
      _
    $region31: #{tpu_custom_call.1} parent=1 // pred_check_branch
      %1014 = sbr.rel (0) target = $region33
    $region32: #{tpu_custom_call.1} parent=1 // pred_region
      %1016 = dma.done [#allocation4], 128
    $region33: #{tpu_custom_call.1} parent=1 // pred_fallthru
      _
    %1017 = vsyncpa [#allocation3], 1
    %1018 = vsyncpa [#allocation4], 1

</llo_original>
